<compile_context>
chip_gen: v7x
topology: tpu7x:2x2x1
jax: 0.10.0
libtpu: 0.0.40
codegen_flags: <defaults>
</compile_context>

<pallas_src>
import functools

import jax
import jax.numpy as jnp
from jax import lax
from jax.experimental import pallas as pl
from jax.experimental.pallas import tpu as pltpu


def _dilated_conv1d_kernel(x_ref, w_ref, b_ref, o_ref, *, dilation, taps, t_out):
    # x_ref: (T, Cin, TR)      rows (batch*node) on lanes, channels on sublanes
    # w_ref: (K, Cout, Cin)    VMEM-resident across the whole grid
    # b_ref: (Cout, 1)         VMEM-resident across the whole grid
    # o_ref: (t_out, Cout, TR)
    cout, tr = o_ref.shape[1], o_ref.shape[2]

    # Hoisted out of the time loop: tap weights stay in vregs, the bias lane
    # broadcast is materialized exactly once per grid step.
    w_taps = [w_ref[k] for k in range(taps)]                       # K x (Cout, Cin)
    bias = jnp.broadcast_to(b_ref[...].astype(jnp.float32), (cout, tr))

    def time_step(t, carry):
        acc = bias                                                 # (Cout, TR) f32
        for k in range(taps):                                      # 7 lane-wide MXU dots
            acc = acc + jnp.dot(
                w_taps[k], x_ref[t + k * dilation],                # (Cout,Cin)@(Cin,TR)
                preferred_element_type=jnp.float32,
            )
        o_ref[t] = acc.astype(o_ref.dtype)                         # lane-dense store
        return carry

    lax.fori_loop(0, t_out, time_step, 0)


def dilated1d(x, weight, bias, *, dilation_factor=2,
              vmem_block_budget_bytes=24 * 1024 * 1024, min_grid_steps=8):
    """Dilated 1-D temporal conv (MTGNN Dilated1D forward).

    x:      (B, Cin, N, T)
    weight: (Cout, Cin, 1, K)   (PyTorch Conv2d layout, kernel height 1)
    bias:   (Cout,)
    returns (B, Cout, N, T_out) with T_out = T - dilation_factor*(K-1).
    """
    B, Cin, N, T = x.shape
    Cout, Cin_w, kh, K = weight.shape
    assert Cin_w == Cin and kh == 1, "weight must be (Cout, Cin, 1, K)"
    t_out = T - dilation_factor * (K - 1)
    assert t_out > 0, "input too short for this kernel/dilation"

    R = B * N
    itemsize = jnp.dtype(x.dtype).itemsize

    # ---- row-tile (TR) selection: fill the VMEM budget, keep the grid long ----
    per_row_bytes = 2 * (Cin * T + Cout * t_out) * itemsize        # double-buffered in+out
    tr_budget = max(128, (vmem_block_budget_bytes // per_row_bytes) // 128 * 128)
    tr_cap = max(128, (R // min_grid_steps) // 128 * 128)          # >= ~8 grid steps
    TR = int(min(tr_budget, tr_cap))
    R_pad = TR * pl.cdiv(R, TR)

    # ---- layout glue (outside the kernel) -------------------------------------
    # (B, Cin, N, T) -> (T, Cin, B*N): rows land on lanes, channels on sublanes.
    x_lanes = jnp.transpose(x, (3, 1, 0, 2)).reshape(T, Cin, R)
    if R_pad != R:
        x_lanes = jnp.pad(x_lanes, ((0, 0), (0, 0), (0, R_pad - R)))

    # (Cout, Cin, 1, K) -> (K, Cout, Cin); feed the MXU in the input dtype.
    w_k = jnp.transpose(weight[:, :, 0, :], (2, 0, 1)).astype(x.dtype)
    b2 = bias.reshape(Cout, 1).astype(jnp.float32)

    kernel = functools.partial(
        _dilated_conv1d_kernel, dilation=dilation_factor, taps=K, t_out=t_out
    )

    flops = 2 * R_pad * t_out * Cout * Cin * K
    bytes_accessed = (
        itemsize * (R_pad * Cin * T + R_pad * Cout * t_out)
        + jnp.dtype(w_k.dtype).itemsize * K * Cout * Cin
        + 4 * Cout
    )

    block_bytes = TR * (Cin * T + Cout * t_out) * itemsize         # single buffer
    vmem_limit = int(min(48 * 1024 * 1024,
                         max(32 * 1024 * 1024, 2 * block_bytes + (4 << 20))))

    out_lanes = pl.pallas_call(
        kernel,
        out_shape=jax.ShapeDtypeStruct((t_out, Cout, R_pad), x.dtype),
        grid=(R_pad // TR,),
        in_specs=[
            # Row tiles stream through the pipeline (double-buffered).
            pl.BlockSpec((T, Cin, TR), lambda i: (0, 0, i)),
            # Weights / bias: constant index_map -> stay resident in VMEM.
            pl.BlockSpec((K, Cout, Cin), lambda i: (0, 0, 0)),
            pl.BlockSpec((Cout, 1), lambda i: (0, 0)),
        ],
        out_specs=pl.BlockSpec((t_out, Cout, TR), lambda i: (0, 0, i)),
        compiler_params=pltpu.CompilerParams(
            dimension_semantics=("parallel",),      # megacore sharding on v7x
            vmem_limit_bytes=vmem_limit,
        ),
        cost_estimate=pl.CostEstimate(
            flops=flops, transcendentals=0, bytes_accessed=int(bytes_accessed)
        ),
    )(x_lanes, w_k, b2)

    out = out_lanes[:, :, :R].reshape(t_out, Cout, B, N)
    return jnp.transpose(out, (2, 1, 3, 0))          # (B, Cout, N, T_out)


def _reference(x, weight, bias, dilation_factor):
    """Pure-JAX reference mirroring nn.Conv2d(cin, cout, (1, K), dilation=(1, d))."""
    out = lax.conv_general_dilated(
        x, weight,
        window_strides=(1, 1),
        padding="VALID",
        rhs_dilation=(1, dilation_factor),
        dimension_numbers=("NCHW", "OIHW", "NCHW"),
    )
    return out + bias[None, :, None, None]


if __name__ == "__main__":
    key = jax.random.PRNGKey(0)
    B, Cin, Cout, N, T = 2, 4, 8, 16, 32
    K, d = 7, 2

    k1, k2, k3 = jax.random.split(key, 3)
    x = jax.random.normal(k1, (B, Cin, N, T), dtype=jnp.float32)
    weight = jax.random.normal(k2, (Cout, Cin, 1, K), dtype=jnp.float32) / jnp.sqrt(
        float(Cin * K)
    )
    bias = 0.1 * jax.random.normal(k3, (Cout,), dtype=jnp.float32)

    out = dilated1d(x, weight, bias, dilation_factor=d)
    out = jax.block_until_ready(out)

    ref = _reference(x, weight, bias, d)
    t_out = T - d * (K - 1)
    assert out.shape == (B, Cout, N, t_out), out.shape
    err = float(jnp.max(jnp.abs(out - ref)))
    assert err < 1e-4, f"mismatch vs reference: {err}"

    print("KERNEL_OK")
</pallas_src>

<mosaic_0001>
module attributes {stable_mosaic.version = 11 : i64} {
  func.func @_dilated_conv1d_kernel(%arg0: i32, %arg1: memref<32x4x128xf32, #tpu.memory_space<vmem>>, %arg2: memref<7x8x4xf32, #tpu.memory_space<vmem>>, %arg3: memref<8x1xf32, #tpu.memory_space<vmem>>, %arg4: memref<20x8x128xf32, #tpu.memory_space<vmem>>) attributes {dimension_semantics = [#tpu.dimension_semantics<parallel>], iteration_bounds = array<i64: 1>, scalar_prefetch = 0 : i64, scratch_operands = 0 : i64, tpu.core_type = #tpu.core_type<tc>, window_params = [{transform_indices = @transform_0, window_bounds = array<i64: 32, 4, 128>}, {pipeline_mode = #tpu.pipeline_mode<synchronous>, transform_indices = @transform_1, window_bounds = array<i64: 7, 8, 4>}, {pipeline_mode = #tpu.pipeline_mode<synchronous>, transform_indices = @transform_2, window_bounds = array<i64: 8, 1>}, {transform_indices = @transform_3, window_bounds = array<i64: 20, 8, 128>}]} {
    %c0 = arith.constant 0 : index
    %c0_0 = arith.constant 0 : index
    %c0_1 = arith.constant 0 : index
    %0 = vector.load %arg2[%c0, %c0_0, %c0_1] : memref<7x8x4xf32, #tpu.memory_space<vmem>>, vector<1x8x4xf32>
    %1 = vector.shape_cast %0 : vector<1x8x4xf32> to vector<8x4xf32>
    %c1 = arith.constant 1 : index
    %c0_2 = arith.constant 0 : index
    %c0_3 = arith.constant 0 : index
    %2 = vector.load %arg2[%c1, %c0_2, %c0_3] : memref<7x8x4xf32, #tpu.memory_space<vmem>>, vector<1x8x4xf32>
    %3 = vector.shape_cast %2 : vector<1x8x4xf32> to vector<8x4xf32>
    %c2 = arith.constant 2 : index
    %c0_4 = arith.constant 0 : index
    %c0_5 = arith.constant 0 : index
    %4 = vector.load %arg2[%c2, %c0_4, %c0_5] : memref<7x8x4xf32, #tpu.memory_space<vmem>>, vector<1x8x4xf32>
    %5 = vector.shape_cast %4 : vector<1x8x4xf32> to vector<8x4xf32>
    %c3 = arith.constant 3 : index
    %c0_6 = arith.constant 0 : index
    %c0_7 = arith.constant 0 : index
    %6 = vector.load %arg2[%c3, %c0_6, %c0_7] : memref<7x8x4xf32, #tpu.memory_space<vmem>>, vector<1x8x4xf32>
    %7 = vector.shape_cast %6 : vector<1x8x4xf32> to vector<8x4xf32>
    %c4 = arith.constant 4 : index
    %c0_8 = arith.constant 0 : index
    %c0_9 = arith.constant 0 : index
    %8 = vector.load %arg2[%c4, %c0_8, %c0_9] : memref<7x8x4xf32, #tpu.memory_space<vmem>>, vector<1x8x4xf32>
    %9 = vector.shape_cast %8 : vector<1x8x4xf32> to vector<8x4xf32>
    %c5 = arith.constant 5 : index
    %c0_10 = arith.constant 0 : index
    %c0_11 = arith.constant 0 : index
    %10 = vector.load %arg2[%c5, %c0_10, %c0_11] : memref<7x8x4xf32, #tpu.memory_space<vmem>>, vector<1x8x4xf32>
    %11 = vector.shape_cast %10 : vector<1x8x4xf32> to vector<8x4xf32>
    %c6 = arith.constant 6 : index
    %c0_12 = arith.constant 0 : index
    %c0_13 = arith.constant 0 : index
    %12 = vector.load %arg2[%c6, %c0_12, %c0_13] : memref<7x8x4xf32, #tpu.memory_space<vmem>>, vector<1x8x4xf32>
    %13 = vector.shape_cast %12 : vector<1x8x4xf32> to vector<8x4xf32>
    %c0_14 = arith.constant 0 : index
    %c0_15 = arith.constant 0 : index
    %14 = vector.load %arg3[%c0_14, %c0_15] : memref<8x1xf32, #tpu.memory_space<vmem>>, vector<8x1xf32>
    %15 = vector.shape_cast %14 : vector<8x1xf32> to vector<8x1xf32>
    %16 = vector.broadcast %15 : vector<8x1xf32> to vector<8x128xf32>
    %c0_i32 = arith.constant 0 : i32
    %c20_i32 = arith.constant 20 : i32
    %17 = arith.addi %c0_i32, %c20_i32 : i32
    %c1_i32 = arith.constant 1 : i32
    scf.for %arg5 = %c0_i32 to %17 step %c1_i32  : i32 {
      %c0_i32_17 = arith.constant 0 : i32
      %18 = arith.addi %arg5, %c0_i32_17 : i32
      %19 = arith.index_cast %18 : i32 to index
      %c0_18 = arith.constant 0 : index
      %c0_19 = arith.constant 0 : index
      %20 = vector.load %arg1[%19, %c0_18, %c0_19] : memref<32x4x128xf32, #tpu.memory_space<vmem>>, vector<1x4x128xf32>
      %21 = vector.shape_cast %20 : vector<1x4x128xf32> to vector<4x128xf32>
      %cst = arith.constant dense<0.000000e+00> : vector<8x128xf32>
      %22 = tpu.matmul %1, %21, %cst {dimension_numbers = #tpu.dot_dimension_numbers<[1], [0], [0], [1], [0, 0, 1, 1], [], []>} : vector<8x4xf32>, vector<4x128xf32>, vector<8x128xf32> -> vector<8x128xf32>
      %23 = arith.addf %16, %22 : vector<8x128xf32>
      %c2_i32 = arith.constant 2 : i32
      %24 = arith.addi %arg5, %c2_i32 : i32
      %25 = arith.index_cast %24 : i32 to index
      %c0_20 = arith.constant 0 : index
      %c0_21 = arith.constant 0 : index
      %26 = vector.load %arg1[%25, %c0_20, %c0_21] : memref<32x4x128xf32, #tpu.memory_space<vmem>>, vector<1x4x128xf32>
      %27 = vector.shape_cast %26 : vector<1x4x128xf32> to vector<4x128xf32>
      %cst_22 = arith.constant dense<0.000000e+00> : vector<8x128xf32>
      %28 = tpu.matmul %3, %27, %cst_22 {dimension_numbers = #tpu.dot_dimension_numbers<[1], [0], [0], [1], [0, 0, 1, 1], [], []>} : vector<8x4xf32>, vector<4x128xf32>, vector<8x128xf32> -> vector<8x128xf32>
      %29 = arith.addf %23, %28 : vector<8x128xf32>
      %c4_i32 = arith.constant 4 : i32
      %30 = arith.addi %arg5, %c4_i32 : i32
      %31 = arith.index_cast %30 : i32 to index
      %c0_23 = arith.constant 0 : index
      %c0_24 = arith.constant 0 : index
      %32 = vector.load %arg1[%31, %c0_23, %c0_24] : memref<32x4x128xf32, #tpu.memory_space<vmem>>, vector<1x4x128xf32>
      %33 = vector.shape_cast %32 : vector<1x4x128xf32> to vector<4x128xf32>
      %cst_25 = arith.constant dense<0.000000e+00> : vector<8x128xf32>
      %34 = tpu.matmul %5, %33, %cst_25 {dimension_numbers = #tpu.dot_dimension_numbers<[1], [0], [0], [1], [0, 0, 1, 1], [], []>} : vector<8x4xf32>, vector<4x128xf32>, vector<8x128xf32> -> vector<8x128xf32>
      %35 = arith.addf %29, %34 : vector<8x128xf32>
      %c6_i32 = arith.constant 6 : i32
      %36 = arith.addi %arg5, %c6_i32 : i32
      %37 = arith.index_cast %36 : i32 to index
      %c0_26 = arith.constant 0 : index
      %c0_27 = arith.constant 0 : index
      %38 = vector.load %arg1[%37, %c0_26, %c0_27] : memref<32x4x128xf32, #tpu.memory_space<vmem>>, vector<1x4x128xf32>
      %39 = vector.shape_cast %38 : vector<1x4x128xf32> to vector<4x128xf32>
      %cst_28 = arith.constant dense<0.000000e+00> : vector<8x128xf32>
      %40 = tpu.matmul %7, %39, %cst_28 {dimension_numbers = #tpu.dot_dimension_numbers<[1], [0], [0], [1], [0, 0, 1, 1], [], []>} : vector<8x4xf32>, vector<4x128xf32>, vector<8x128xf32> -> vector<8x128xf32>
      %41 = arith.addf %35, %40 : vector<8x128xf32>
      %c8_i32 = arith.constant 8 : i32
      %42 = arith.addi %arg5, %c8_i32 : i32
      %43 = arith.index_cast %42 : i32 to index
      %c0_29 = arith.constant 0 : index
      %c0_30 = arith.constant 0 : index
      %44 = vector.load %arg1[%43, %c0_29, %c0_30] : memref<32x4x128xf32, #tpu.memory_space<vmem>>, vector<1x4x128xf32>
      %45 = vector.shape_cast %44 : vector<1x4x128xf32> to vector<4x128xf32>
      %cst_31 = arith.constant dense<0.000000e+00> : vector<8x128xf32>
      %46 = tpu.matmul %9, %45, %cst_31 {dimension_numbers = #tpu.dot_dimension_numbers<[1], [0], [0], [1], [0, 0, 1, 1], [], []>} : vector<8x4xf32>, vector<4x128xf32>, vector<8x128xf32> -> vector<8x128xf32>
      %47 = arith.addf %41, %46 : vector<8x128xf32>
      %c10_i32 = arith.constant 10 : i32
      %48 = arith.addi %arg5, %c10_i32 : i32
      %49 = arith.index_cast %48 : i32 to index
      %c0_32 = arith.constant 0 : index
      %c0_33 = arith.constant 0 : index
      %50 = vector.load %arg1[%49, %c0_32, %c0_33] : memref<32x4x128xf32, #tpu.memory_space<vmem>>, vector<1x4x128xf32>
      %51 = vector.shape_cast %50 : vector<1x4x128xf32> to vector<4x128xf32>
      %cst_34 = arith.constant dense<0.000000e+00> : vector<8x128xf32>
      %52 = tpu.matmul %11, %51, %cst_34 {dimension_numbers = #tpu.dot_dimension_numbers<[1], [0], [0], [1], [0, 0, 1, 1], [], []>} : vector<8x4xf32>, vector<4x128xf32>, vector<8x128xf32> -> vector<8x128xf32>
      %53 = arith.addf %47, %52 : vector<8x128xf32>
      %c12_i32 = arith.constant 12 : i32
      %54 = arith.addi %arg5, %c12_i32 : i32
      %55 = arith.index_cast %54 : i32 to index
      %c0_35 = arith.constant 0 : index
      %c0_36 = arith.constant 0 : index
      %56 = vector.load %arg1[%55, %c0_35, %c0_36] : memref<32x4x128xf32, #tpu.memory_space<vmem>>, vector<1x4x128xf32>
      %57 = vector.shape_cast %56 : vector<1x4x128xf32> to vector<4x128xf32>
      %cst_37 = arith.constant dense<0.000000e+00> : vector<8x128xf32>
      %58 = tpu.matmul %13, %57, %cst_37 {dimension_numbers = #tpu.dot_dimension_numbers<[1], [0], [0], [1], [0, 0, 1, 1], [], []>} : vector<8x4xf32>, vector<4x128xf32>, vector<8x128xf32> -> vector<8x128xf32>
      %59 = arith.addf %53, %58 : vector<8x128xf32>
      %60 = arith.index_cast %arg5 : i32 to index
      %c0_38 = arith.constant 0 : index
      %c0_39 = arith.constant 0 : index
      %61 = vector.load %arg4[%60, %c0_38, %c0_39] : memref<20x8x128xf32, #tpu.memory_space<vmem>>, vector<1x8x128xf32>
      %62 = vector.shape_cast %61 : vector<1x8x128xf32> to vector<8x128xf32>
      %63 = vector.shape_cast %59 : vector<8x128xf32> to vector<1x8x128xf32>
      tpu.vector_store %arg4[%60, %c0_38, %c0_39], %63 {strides = array<i32>} : memref<20x8x128xf32, #tpu.memory_space<vmem>>, vector<1x8x128xf32>,
    }
    %c20_i32_16 = arith.constant 20 : i32
    return
  }
  func.func @transform_0(%arg0: i32) -> (i32, i32, i32) {
    %c0_i32 = arith.constant 0 : i32
    %c0_i32_0 = arith.constant 0 : i32
    %c0_i32_1 = arith.constant 0 : i32
    return %c0_i32, %c0_i32_0, %arg0 : i32, i32, i32
  }
  func.func @transform_1(%arg0: i32) -> (i32, i32, i32) {
    %c0_i32 = arith.constant 0 : i32
    %c0_i32_0 = arith.constant 0 : i32
    %c0_i32_1 = arith.constant 0 : i32
    %c0_i32_2 = arith.constant 0 : i32
    return %c0_i32, %c0_i32_0, %c0_i32_1 : i32, i32, i32
  }
  func.func @transform_2(%arg0: i32) -> (i32, i32) {
    %c0_i32 = arith.constant 0 : i32
    %c0_i32_0 = arith.constant 0 : i32
    %c0_i32_1 = arith.constant 0 : i32
    return %c0_i32, %c0_i32_0 : i32, i32
  }
  func.func @transform_3(%arg0: i32) -> (i32, i32, i32) {
    %c0_i32 = arith.constant 0 : i32
    %c0_i32_0 = arith.constant 0 : i32
    %c0_i32_1 = arith.constant 0 : i32
    return %c0_i32, %c0_i32_0, %arg0 : i32, i32, i32
  }
}

</mosaic_0001>

<llo_original>
// kernel: tpu_custom_call.1
$region0: #{tpu_custom_call.1}
  #allocation0 [shape = 'u32[]', space=smem, size = 0x4, offset = 0x4, fixed_abs, tag = 'smem constant byte address 0x4 - core index']
  #allocation1 [shape = 'u32[144,128]{1,0:T(1,128)}', space=vmem, size = 0x12000, scoped, tag = 'internal scratch']
  %s0 = inlined_call_operand.hbm [shape: f32[32,4,128], index: 0, kind: input, shape index: {}]
  %s1 = inlined_call_operand.vmem [shape: f32[7,8,4], index: 1, kind: input, shape index: {}]
  %s2 = inlined_call_operand.vmem [shape: f32[8,1], index: 2, kind: input, shape index: {}]
  %s3 = inlined_call_operand.hbm [shape: f32[20,8,128], index: 3, kind: output, shape index: {}]
  %s4 = sld [smem:[#allocation0]]
  $region33: #{tpu_custom_call.1} parent=0
    _
  %s6 = ssub.s32 1, %s4
  %s7 = scalar_select 0, %s6, %s4
  $region1: #{tpu_custom_call.1} parent=0
    #allocation2 [shape = 'u8[65536]{0}', space=vmem, size = 0x10000, scoped, tag = 'input window, operand 0, single buffered']
    #allocation3 [shape = 's32[1]{0}', space=sflag, size = 0x4, scoped, tag = 'scoped memory for tpu_custom_call.1']
    #allocation4 [shape = 's32[1]{0}', space=sflag, size = 0x4, scoped, tag = 'scoped memory for tpu_custom_call.1']
    #allocation5 [shape = 'u8[81920]{0}', space=vmem, size = 0x14000, scoped, tag = 'output window, operand 0, single buffered']
    %8 = vsyncpa [#allocation3], 0
    %9 = vsyncpa [#allocation4], 0
    // Predicated region
    $region2: #{tpu_custom_call.1} parent=1 // pred_check
      _
    $region3: #{tpu_custom_call.1} parent=1 // pred_check_branch
      %11 = sbr.rel (0) target = $region5
    $region4: #{tpu_custom_call.1} parent=1 // pred_region
      %s13 = ssub.s32 2048, 2048
      %14 = vsyncadd [#allocation3], %s13
      %s15 = sshll.u32 [#allocation2], 4
      %s16 = int_to_ptr.vmem [resolvable:$true] %s15
      %21 = dma.hbm_to_vmem [thread:$0]  %s0, 2048, %s16, [#allocation3], 64, 64, 4
    $region5: #{tpu_custom_call.1} parent=1 // pred_fallthru
      _
    // Predicated region
    $region6: #{tpu_custom_call.1} parent=1 // pred_check
      _
    $region7: #{tpu_custom_call.1} parent=1 // pred_check_branch
      %23 = sbr.rel (0) target = $region9
    $region8: #{tpu_custom_call.1} parent=1 // pred_region
      _
    $region9: #{tpu_custom_call.1} parent=1 // pred_fallthru
      _
    // Predicated region
    $region10: #{tpu_custom_call.1} parent=1 // pred_check
      _
    $region11: #{tpu_custom_call.1} parent=1 // pred_check_branch
      %25 = sbr.rel (0) target = $region13
    $region12: #{tpu_custom_call.1} parent=1 // pred_region
      _
    $region13: #{tpu_custom_call.1} parent=1 // pred_fallthru
      _
    // Predicated region
    $region14: #{tpu_custom_call.1} parent=1 // pred_check
      _
    $region15: #{tpu_custom_call.1} parent=1 // pred_check_branch
      %27 = sbr.rel (0) target = $region17
    $region16: #{tpu_custom_call.1} parent=1 // pred_region
      %28 = dma.done [#allocation3], 2048
    $region17: #{tpu_custom_call.1} parent=1 // pred_fallthru
      _
    %v29 = vld [vmem:[%s1] sm:$0xff]
    %s30 = scalar_lea.vmem %s1, 8
    %v31 = vld [vmem:[%s30] sm:$0xff]
    %s32 = scalar_lea.vmem %s1, 16
    %v33 = vld [vmem:[%s32] sm:$0xff]
    %s34 = scalar_lea.vmem %s1, 24
    %v35 = vld [vmem:[%s34] sm:$0xff]
    %s36 = scalar_lea.vmem %s1, 32
    %v37 = vld [vmem:[%s36] sm:$0xff]
    %s38 = scalar_lea.vmem %s1, 40
    %v39 = vld [vmem:[%s38] sm:$0xff]
    %s40 = scalar_lea.vmem %s1, 48
    %v41 = vld [vmem:[%s40] sm:$0xff]
    %v42 = vld [vmem:[%s2] sm:$0xff]
    %44 = vset.pattern.permute.xlu0 0
    %45 = vperm.xlu0 %44, %v42
    %v46 = vpop.permute.xlu0 %45
    loop: start=0, step=1, limit=20
    $region18: #{tpu_custom_call.1} parent=1 // loop_pre_header
      _
    $region19: #{tpu_custom_call.1} parent=1 // loop_header
      %s49 = sphi 0, %s53
      %p50 = scmp.ge.s32.totalorder %s49, 20
    $region20: #{tpu_custom_call.1} parent=1 // loop_header_branch
      %52 = sbr.rel (%p50) target = $region24
    $region21: #{tpu_custom_call.1} parent=1 // loop_body
      %s54 = smul.u32 %s49, 4
      %s55 = scalar_lea.vmem [#allocation2], %s54
      %v56 = vld [vmem:[%s55] sm:$0xf]
      %vm57 = vcmask 31744
      %v59 = vsel %vm57, %v29, 0
      %vm61 = vcmask 1043456
      %v63 = vsel %vm61, %v56, 0
      %65 = vmatprep.subr.mxu0 0.0
      %66 = vmatpush1.msra.mxu0 %v63
      %67 = vmatprep.subr.mxu0 0.0
      %68 = vmatpush1.msra.mxu0 0.0
      %69 = vmatprep.subr.mxu0 0.0
      %70 = vmatpush1.msra.mxu0 0.0
      %71 = vmatprep.subr.mxu0 0.0
      %72 = vmatpush1.msra.mxu0 0.0
      %73 = vmatprep.subr.mxu0 0.0
      %74 = vmatpush1.msra.mxu0 0.0
      %75 = vmatprep.subr.mxu0 0.0
      %76 = vmatpush1.msra.mxu0 0.0
      %77 = vmatprep.subr.mxu0 0.0
      %78 = vmatpush1.msra.mxu0 0.0
      %79 = vmatprep.subr.mxu0 0.0
      %80 = vmatpush1.msra.mxu0 0.0
      %81 = vmatprep.subr.mxu0 0.0
      %82 = vmatpush1.msra.mxu0 0.0
      %83 = vmatprep.subr.mxu0 0.0
      %84 = vmatpush1.msra.mxu0 0.0
      %85 = vmatprep.subr.mxu0 0.0
      %86 = vmatpush1.msra.mxu0 0.0
      %87 = vmatprep.subr.mxu0 0.0
      %88 = vmatpush1.msra.mxu0 0.0
      %89 = vmatprep.subr.mxu0 0.0
      %90 = vmatpush1.msra.mxu0 0.0
      %91 = vmatprep.subr.mxu0 0.0
      %92 = vmatpush1.msra.mxu0 0.0
      %93 = vmatprep.subr.mxu0 0.0
      %94 = vmatpush1.msra.mxu0 0.0
      %95 = vmatprep.subr.mxu0 0.0
      %96 = vmatpush1.msra.mxu0 0.0
      %97 = vmatprep.subr.mxu0 0.0
      %98 = vmatpush1.msra.mxu0 0.0
      %99 = vmatprep.subr.mxu0 0.0
      %100 = vmatpush1.msra.mxu0 0.0
      %101 = vmatprep.subr.mxu0 0.0
      %102 = vmatpush1.msra.mxu0 0.0
      %103 = vmatprep.subr.mxu0 0.0
      %104 = vmatpush1.msra.mxu0 0.0
      %105 = vmatprep.subr.mxu0 0.0
      %106 = vmatpush1.msra.mxu0 0.0
      %107 = vmatprep.subr.mxu0 0.0
      %108 = vmatpush1.msra.mxu0 0.0
      %109 = vmatprep.subr.mxu0 0.0
      %110 = vmatpush1.msra.mxu0 0.0
      %111 = vmatprep.subr.mxu0 0.0
      %112 = vmatpush1.msra.mxu0 0.0
      %113 = vmatprep.subr.mxu0 0.0
      %114 = vmatpush1.msra.mxu0 0.0
      %115 = vmatprep.subr.mxu0 0.0
      %116 = vmatpush1.msra.mxu0 0.0
      %117 = vmatprep.subr.mxu0 0.0
      %118 = vmatpush1.msra.mxu0 0.0
      %119 = vmatprep.subr.mxu0 0.0
      %120 = vmatpush1.msra.mxu0 0.0
      %121 = vmatprep.subr.mxu0 0.0
      %122 = vmatpush1.msra.mxu0 0.0
      %123 = vmatprep.subr.mxu0 0.0
      %124 = vmatpush1.msra.mxu0 0.0
      %125 = vmatprep.subr.mxu0 0.0
      %126 = vmatpush1.msra.mxu0 0.0
      %127 = vmatprep.subr.mxu0 0.0
      %128 = vmatpush1.msra.mxu0 0.0
      %129 = vmatprep.mubr.f32.mxu0 0.0
      %130 = vmatmul.mubr.f32.gmra.mrb[0].mxu0 %v59
      %v131 = vpop.f32.mrb[0].mxu0
      %v132 = vadd.f32 0.0, %v131
      %v133 = vpop.f32.mrb[0].mxu0
      %134 = vdwg.mxu0
      %v135 = vadd.f32 %v46, %v132
      %s136 = sadd.s32 %s49, 2
      %s137 = smul.u32 %s136, 4
      %s138 = scalar_lea.vmem [#allocation2], %s137
      %v139 = vld [vmem:[%s138] sm:$0xf]
      %v141 = vsel %vm57, %v31, 0
      %v144 = vsel %vm61, %v139, 0
      %146 = vmatprep.subr.mxu0 0.0
      %147 = vmatpush1.msra.mxu0 %v144
      %148 = vmatprep.subr.mxu0 0.0
      %149 = vmatpush1.msra.mxu0 0.0
      %150 = vmatprep.subr.mxu0 0.0
      %151 = vmatpush1.msra.mxu0 0.0
      %152 = vmatprep.subr.mxu0 0.0
      %153 = vmatpush1.msra.mxu0 0.0
      %154 = vmatprep.subr.mxu0 0.0
      %155 = vmatpush1.msra.mxu0 0.0
      %156 = vmatprep.subr.mxu0 0.0
      %157 = vmatpush1.msra.mxu0 0.0
      %158 = vmatprep.subr.mxu0 0.0
      %159 = vmatpush1.msra.mxu0 0.0
      %160 = vmatprep.subr.mxu0 0.0
      %161 = vmatpush1.msra.mxu0 0.0
      %162 = vmatprep.subr.mxu0 0.0
      %163 = vmatpush1.msra.mxu0 0.0
      %164 = vmatprep.subr.mxu0 0.0
      %165 = vmatpush1.msra.mxu0 0.0
      %166 = vmatprep.subr.mxu0 0.0
      %167 = vmatpush1.msra.mxu0 0.0
      %168 = vmatprep.subr.mxu0 0.0
      %169 = vmatpush1.msra.mxu0 0.0
      %170 = vmatprep.subr.mxu0 0.0
      %171 = vmatpush1.msra.mxu0 0.0
      %172 = vmatprep.subr.mxu0 0.0
      %173 = vmatpush1.msra.mxu0 0.0
      %174 = vmatprep.subr.mxu0 0.0
      %175 = vmatpush1.msra.mxu0 0.0
      %176 = vmatprep.subr.mxu0 0.0
      %177 = vmatpush1.msra.mxu0 0.0
      %178 = vmatprep.subr.mxu0 0.0
      %179 = vmatpush1.msra.mxu0 0.0
      %180 = vmatprep.subr.mxu0 0.0
      %181 = vmatpush1.msra.mxu0 0.0
      %182 = vmatprep.subr.mxu0 0.0
      %183 = vmatpush1.msra.mxu0 0.0
      %184 = vmatprep.subr.mxu0 0.0
      %185 = vmatpush1.msra.mxu0 0.0
      %186 = vmatprep.subr.mxu0 0.0
      %187 = vmatpush1.msra.mxu0 0.0
      %188 = vmatprep.subr.mxu0 0.0
      %189 = vmatpush1.msra.mxu0 0.0
      %190 = vmatprep.subr.mxu0 0.0
      %191 = vmatpush1.msra.mxu0 0.0
      %192 = vmatprep.subr.mxu0 0.0
      %193 = vmatpush1.msra.mxu0 0.0
      %194 = vmatprep.subr.mxu0 0.0
      %195 = vmatpush1.msra.mxu0 0.0
      %196 = vmatprep.subr.mxu0 0.0
      %197 = vmatpush1.msra.mxu0 0.0
      %198 = vmatprep.subr.mxu0 0.0
      %199 = vmatpush1.msra.mxu0 0.0
      %200 = vmatprep.subr.mxu0 0.0
      %201 = vmatpush1.msra.mxu0 0.0
      %202 = vmatprep.subr.mxu0 0.0
      %203 = vmatpush1.msra.mxu0 0.0
      %204 = vmatprep.subr.mxu0 0.0
      %205 = vmatpush1.msra.mxu0 0.0
      %206 = vmatprep.subr.mxu0 0.0
      %207 = vmatpush1.msra.mxu0 0.0
      %208 = vmatprep.subr.mxu0 0.0
      %209 = vmatpush1.msra.mxu0 0.0
      %210 = vmatprep.mubr.f32.mxu0 0.0
      %211 = vmatmul.mubr.f32.gmra.mrb[0].mxu0 %v141
      %v212 = vpop.f32.mrb[0].mxu0
      %v213 = vadd.f32 0.0, %v212
      %v214 = vpop.f32.mrb[0].mxu0
      %215 = vdwg.mxu0
      %v216 = vadd.f32 %v135, %v213
      %s217 = sadd.s32 %s49, 4
      %s218 = smul.u32 %s217, 4
      %s219 = scalar_lea.vmem [#allocation2], %s218
      %v220 = vld [vmem:[%s219] sm:$0xf]
      %v222 = vsel %vm57, %v33, 0
      %v225 = vsel %vm61, %v220, 0
      %227 = vmatprep.subr.mxu0 0.0
      %228 = vmatpush1.msra.mxu0 %v225
      %229 = vmatprep.subr.mxu0 0.0
      %230 = vmatpush1.msra.mxu0 0.0
      %231 = vmatprep.subr.mxu0 0.0
      %232 = vmatpush1.msra.mxu0 0.0
      %233 = vmatprep.subr.mxu0 0.0
      %234 = vmatpush1.msra.mxu0 0.0
      %235 = vmatprep.subr.mxu0 0.0
      %236 = vmatpush1.msra.mxu0 0.0
      %237 = vmatprep.subr.mxu0 0.0
      %238 = vmatpush1.msra.mxu0 0.0
      %239 = vmatprep.subr.mxu0 0.0
      %240 = vmatpush1.msra.mxu0 0.0
      %241 = vmatprep.subr.mxu0 0.0
      %242 = vmatpush1.msra.mxu0 0.0
      %243 = vmatprep.subr.mxu0 0.0
      %244 = vmatpush1.msra.mxu0 0.0
      %245 = vmatprep.subr.mxu0 0.0
      %246 = vmatpush1.msra.mxu0 0.0
      %247 = vmatprep.subr.mxu0 0.0
      %248 = vmatpush1.msra.mxu0 0.0
      %249 = vmatprep.subr.mxu0 0.0
      %250 = vmatpush1.msra.mxu0 0.0
      %251 = vmatprep.subr.mxu0 0.0
      %252 = vmatpush1.msra.mxu0 0.0
      %253 = vmatprep.subr.mxu0 0.0
      %254 = vmatpush1.msra.mxu0 0.0
      %255 = vmatprep.subr.mxu0 0.0
      %256 = vmatpush1.msra.mxu0 0.0
      %257 = vmatprep.subr.mxu0 0.0
      %258 = vmatpush1.msra.mxu0 0.0
      %259 = vmatprep.subr.mxu0 0.0
      %260 = vmatpush1.msra.mxu0 0.0
      %261 = vmatprep.subr.mxu0 0.0
      %262 = vmatpush1.msra.mxu0 0.0
      %263 = vmatprep.subr.mxu0 0.0
      %264 = vmatpush1.msra.mxu0 0.0
      %265 = vmatprep.subr.mxu0 0.0
      %266 = vmatpush1.msra.mxu0 0.0
      %267 = vmatprep.subr.mxu0 0.0
      %268 = vmatpush1.msra.mxu0 0.0
      %269 = vmatprep.subr.mxu0 0.0
      %270 = vmatpush1.msra.mxu0 0.0
      %271 = vmatprep.subr.mxu0 0.0
      %272 = vmatpush1.msra.mxu0 0.0
      %273 = vmatprep.subr.mxu0 0.0
      %274 = vmatpush1.msra.mxu0 0.0
      %275 = vmatprep.subr.mxu0 0.0
      %276 = vmatpush1.msra.mxu0 0.0
      %277 = vmatprep.subr.mxu0 0.0
      %278 = vmatpush1.msra.mxu0 0.0
      %279 = vmatprep.subr.mxu0 0.0
      %280 = vmatpush1.msra.mxu0 0.0
      %281 = vmatprep.subr.mxu0 0.0
      %282 = vmatpush1.msra.mxu0 0.0
      %283 = vmatprep.subr.mxu0 0.0
      %284 = vmatpush1.msra.mxu0 0.0
      %285 = vmatprep.subr.mxu0 0.0
      %286 = vmatpush1.msra.mxu0 0.0
      %287 = vmatprep.subr.mxu0 0.0
      %288 = vmatpush1.msra.mxu0 0.0
      %289 = vmatprep.subr.mxu0 0.0
      %290 = vmatpush1.msra.mxu0 0.0
      %291 = vmatprep.mubr.f32.mxu0 0.0
      %292 = vmatmul.mubr.f32.gmra.mrb[0].mxu0 %v222
      %v293 = vpop.f32.mrb[0].mxu0
      %v294 = vadd.f32 0.0, %v293
      %v295 = vpop.f32.mrb[0].mxu0
      %296 = vdwg.mxu0
      %v297 = vadd.f32 %v216, %v294
      %s298 = sadd.s32 %s49, 6
      %s299 = smul.u32 %s298, 4
      %s300 = scalar_lea.vmem [#allocation2], %s299
      %v301 = vld [vmem:[%s300] sm:$0xf]
      %v303 = vsel %vm57, %v35, 0
      %v306 = vsel %vm61, %v301, 0
      %308 = vmatprep.subr.mxu0 0.0
      %309 = vmatpush1.msra.mxu0 %v306
      %310 = vmatprep.subr.mxu0 0.0
      %311 = vmatpush1.msra.mxu0 0.0
      %312 = vmatprep.subr.mxu0 0.0
      %313 = vmatpush1.msra.mxu0 0.0
      %314 = vmatprep.subr.mxu0 0.0
      %315 = vmatpush1.msra.mxu0 0.0
      %316 = vmatprep.subr.mxu0 0.0
      %317 = vmatpush1.msra.mxu0 0.0
      %318 = vmatprep.subr.mxu0 0.0
      %319 = vmatpush1.msra.mxu0 0.0
      %320 = vmatprep.subr.mxu0 0.0
      %321 = vmatpush1.msra.mxu0 0.0
      %322 = vmatprep.subr.mxu0 0.0
      %323 = vmatpush1.msra.mxu0 0.0
      %324 = vmatprep.subr.mxu0 0.0
      %325 = vmatpush1.msra.mxu0 0.0
      %326 = vmatprep.subr.mxu0 0.0
      %327 = vmatpush1.msra.mxu0 0.0
      %328 = vmatprep.subr.mxu0 0.0
      %329 = vmatpush1.msra.mxu0 0.0
      %330 = vmatprep.subr.mxu0 0.0
      %331 = vmatpush1.msra.mxu0 0.0
      %332 = vmatprep.subr.mxu0 0.0
      %333 = vmatpush1.msra.mxu0 0.0
      %334 = vmatprep.subr.mxu0 0.0
      %335 = vmatpush1.msra.mxu0 0.0
      %336 = vmatprep.subr.mxu0 0.0
      %337 = vmatpush1.msra.mxu0 0.0
      %338 = vmatprep.subr.mxu0 0.0
      %339 = vmatpush1.msra.mxu0 0.0
      %340 = vmatprep.subr.mxu0 0.0
      %341 = vmatpush1.msra.mxu0 0.0
      %342 = vmatprep.subr.mxu0 0.0
      %343 = vmatpush1.msra.mxu0 0.0
      %344 = vmatprep.subr.mxu0 0.0
      %345 = vmatpush1.msra.mxu0 0.0
      %346 = vmatprep.subr.mxu0 0.0
      %347 = vmatpush1.msra.mxu0 0.0
      %348 = vmatprep.subr.mxu0 0.0
      %349 = vmatpush1.msra.mxu0 0.0
      %350 = vmatprep.subr.mxu0 0.0
      %351 = vmatpush1.msra.mxu0 0.0
      %352 = vmatprep.subr.mxu0 0.0
      %353 = vmatpush1.msra.mxu0 0.0
      %354 = vmatprep.subr.mxu0 0.0
      %355 = vmatpush1.msra.mxu0 0.0
      %356 = vmatprep.subr.mxu0 0.0
      %357 = vmatpush1.msra.mxu0 0.0
      %358 = vmatprep.subr.mxu0 0.0
      %359 = vmatpush1.msra.mxu0 0.0
      %360 = vmatprep.subr.mxu0 0.0
      %361 = vmatpush1.msra.mxu0 0.0
      %362 = vmatprep.subr.mxu0 0.0
      %363 = vmatpush1.msra.mxu0 0.0
      %364 = vmatprep.subr.mxu0 0.0
      %365 = vmatpush1.msra.mxu0 0.0
      %366 = vmatprep.subr.mxu0 0.0
      %367 = vmatpush1.msra.mxu0 0.0
      %368 = vmatprep.subr.mxu0 0.0
      %369 = vmatpush1.msra.mxu0 0.0
      %370 = vmatprep.subr.mxu0 0.0
      %371 = vmatpush1.msra.mxu0 0.0
      %372 = vmatprep.mubr.f32.mxu0 0.0
      %373 = vmatmul.mubr.f32.gmra.mrb[0].mxu0 %v303
      %v374 = vpop.f32.mrb[0].mxu0
      %v375 = vadd.f32 0.0, %v374
      %v376 = vpop.f32.mrb[0].mxu0
      %377 = vdwg.mxu0
      %v378 = vadd.f32 %v297, %v375
      %s379 = sadd.s32 %s49, 8
      %s380 = smul.u32 %s379, 4
      %s381 = scalar_lea.vmem [#allocation2], %s380
      %v382 = vld [vmem:[%s381] sm:$0xf]
      %v384 = vsel %vm57, %v37, 0
      %v387 = vsel %vm61, %v382, 0
      %389 = vmatprep.subr.mxu0 0.0
      %390 = vmatpush1.msra.mxu0 %v387
      %391 = vmatprep.subr.mxu0 0.0
      %392 = vmatpush1.msra.mxu0 0.0
      %393 = vmatprep.subr.mxu0 0.0
      %394 = vmatpush1.msra.mxu0 0.0
      %395 = vmatprep.subr.mxu0 0.0
      %396 = vmatpush1.msra.mxu0 0.0
      %397 = vmatprep.subr.mxu0 0.0
      %398 = vmatpush1.msra.mxu0 0.0
      %399 = vmatprep.subr.mxu0 0.0
      %400 = vmatpush1.msra.mxu0 0.0
      %401 = vmatprep.subr.mxu0 0.0
      %402 = vmatpush1.msra.mxu0 0.0
      %403 = vmatprep.subr.mxu0 0.0
      %404 = vmatpush1.msra.mxu0 0.0
      %405 = vmatprep.subr.mxu0 0.0
      %406 = vmatpush1.msra.mxu0 0.0
      %407 = vmatprep.subr.mxu0 0.0
      %408 = vmatpush1.msra.mxu0 0.0
      %409 = vmatprep.subr.mxu0 0.0
      %410 = vmatpush1.msra.mxu0 0.0
      %411 = vmatprep.subr.mxu0 0.0
      %412 = vmatpush1.msra.mxu0 0.0
      %413 = vmatprep.subr.mxu0 0.0
      %414 = vmatpush1.msra.mxu0 0.0
      %415 = vmatprep.subr.mxu0 0.0
      %416 = vmatpush1.msra.mxu0 0.0
      %417 = vmatprep.subr.mxu0 0.0
      %418 = vmatpush1.msra.mxu0 0.0
      %419 = vmatprep.subr.mxu0 0.0
      %420 = vmatpush1.msra.mxu0 0.0
      %421 = vmatprep.subr.mxu0 0.0
      %422 = vmatpush1.msra.mxu0 0.0
      %423 = vmatprep.subr.mxu0 0.0
      %424 = vmatpush1.msra.mxu0 0.0
      %425 = vmatprep.subr.mxu0 0.0
      %426 = vmatpush1.msra.mxu0 0.0
      %427 = vmatprep.subr.mxu0 0.0
      %428 = vmatpush1.msra.mxu0 0.0
      %429 = vmatprep.subr.mxu0 0.0
      %430 = vmatpush1.msra.mxu0 0.0
      %431 = vmatprep.subr.mxu0 0.0
      %432 = vmatpush1.msra.mxu0 0.0
      %433 = vmatprep.subr.mxu0 0.0
      %434 = vmatpush1.msra.mxu0 0.0
      %435 = vmatprep.subr.mxu0 0.0
      %436 = vmatpush1.msra.mxu0 0.0
      %437 = vmatprep.subr.mxu0 0.0
      %438 = vmatpush1.msra.mxu0 0.0
      %439 = vmatprep.subr.mxu0 0.0
      %440 = vmatpush1.msra.mxu0 0.0
      %441 = vmatprep.subr.mxu0 0.0
      %442 = vmatpush1.msra.mxu0 0.0
      %443 = vmatprep.subr.mxu0 0.0
      %444 = vmatpush1.msra.mxu0 0.0
      %445 = vmatprep.subr.mxu0 0.0
      %446 = vmatpush1.msra.mxu0 0.0
      %447 = vmatprep.subr.mxu0 0.0
      %448 = vmatpush1.msra.mxu0 0.0
      %449 = vmatprep.subr.mxu0 0.0
      %450 = vmatpush1.msra.mxu0 0.0
      %451 = vmatprep.subr.mxu0 0.0
      %452 = vmatpush1.msra.mxu0 0.0
      %453 = vmatprep.mubr.f32.mxu0 0.0
      %454 = vmatmul.mubr.f32.gmra.mrb[0].mxu0 %v384
      %v455 = vpop.f32.mrb[0].mxu0
      %v456 = vadd.f32 0.0, %v455
      %v457 = vpop.f32.mrb[0].mxu0
      %458 = vdwg.mxu0
      %v459 = vadd.f32 %v378, %v456
      %s460 = sadd.s32 %s49, 10
      %s461 = smul.u32 %s460, 4
      %s462 = scalar_lea.vmem [#allocation2], %s461
      %v463 = vld [vmem:[%s462] sm:$0xf]
      %v465 = vsel %vm57, %v39, 0
      %v468 = vsel %vm61, %v463, 0
      %470 = vmatprep.subr.mxu0 0.0
      %471 = vmatpush1.msra.mxu0 %v468
      %472 = vmatprep.subr.mxu0 0.0
      %473 = vmatpush1.msra.mxu0 0.0
      %474 = vmatprep.subr.mxu0 0.0
      %475 = vmatpush1.msra.mxu0 0.0
      %476 = vmatprep.subr.mxu0 0.0
      %477 = vmatpush1.msra.mxu0 0.0
      %478 = vmatprep.subr.mxu0 0.0
      %479 = vmatpush1.msra.mxu0 0.0
      %480 = vmatprep.subr.mxu0 0.0
      %481 = vmatpush1.msra.mxu0 0.0
      %482 = vmatprep.subr.mxu0 0.0
      %483 = vmatpush1.msra.mxu0 0.0
      %484 = vmatprep.subr.mxu0 0.0
      %485 = vmatpush1.msra.mxu0 0.0
      %486 = vmatprep.subr.mxu0 0.0
      %487 = vmatpush1.msra.mxu0 0.0
      %488 = vmatprep.subr.mxu0 0.0
      %489 = vmatpush1.msra.mxu0 0.0
      %490 = vmatprep.subr.mxu0 0.0
      %491 = vmatpush1.msra.mxu0 0.0
      %492 = vmatprep.subr.mxu0 0.0
      %493 = vmatpush1.msra.mxu0 0.0
      %494 = vmatprep.subr.mxu0 0.0
      %495 = vmatpush1.msra.mxu0 0.0
      %496 = vmatprep.subr.mxu0 0.0
      %497 = vmatpush1.msra.mxu0 0.0
      %498 = vmatprep.subr.mxu0 0.0
      %499 = vmatpush1.msra.mxu0 0.0
      %500 = vmatprep.subr.mxu0 0.0
      %501 = vmatpush1.msra.mxu0 0.0
      %502 = vmatprep.subr.mxu0 0.0
      %503 = vmatpush1.msra.mxu0 0.0
      %504 = vmatprep.subr.mxu0 0.0
      %505 = vmatpush1.msra.mxu0 0.0
      %506 = vmatprep.subr.mxu0 0.0
      %507 = vmatpush1.msra.mxu0 0.0
      %508 = vmatprep.subr.mxu0 0.0
      %509 = vmatpush1.msra.mxu0 0.0
      %510 = vmatprep.subr.mxu0 0.0
      %511 = vmatpush1.msra.mxu0 0.0
      %512 = vmatprep.subr.mxu0 0.0
      %513 = vmatpush1.msra.mxu0 0.0
      %514 = vmatprep.subr.mxu0 0.0
      %515 = vmatpush1.msra.mxu0 0.0
      %516 = vmatprep.subr.mxu0 0.0
      %517 = vmatpush1.msra.mxu0 0.0
      %518 = vmatprep.subr.mxu0 0.0
      %519 = vmatpush1.msra.mxu0 0.0
      %520 = vmatprep.subr.mxu0 0.0
      %521 = vmatpush1.msra.mxu0 0.0
      %522 = vmatprep.subr.mxu0 0.0
      %523 = vmatpush1.msra.mxu0 0.0
      %524 = vmatprep.subr.mxu0 0.0
      %525 = vmatpush1.msra.mxu0 0.0
      %526 = vmatprep.subr.mxu0 0.0
      %527 = vmatpush1.msra.mxu0 0.0
      %528 = vmatprep.subr.mxu0 0.0
      %529 = vmatpush1.msra.mxu0 0.0
      %530 = vmatprep.subr.mxu0 0.0
      %531 = vmatpush1.msra.mxu0 0.0
      %532 = vmatprep.subr.mxu0 0.0
      %533 = vmatpush1.msra.mxu0 0.0
      %534 = vmatprep.mubr.f32.mxu0 0.0
      %535 = vmatmul.mubr.f32.gmra.mrb[0].mxu0 %v465
      %v536 = vpop.f32.mrb[0].mxu0
      %v537 = vadd.f32 0.0, %v536
      %v538 = vpop.f32.mrb[0].mxu0
      %539 = vdwg.mxu0
      %v540 = vadd.f32 %v459, %v537
      %s541 = sadd.s32 %s49, 12
      %s542 = smul.u32 %s541, 4
      %s543 = scalar_lea.vmem [#allocation2], %s542
      %v544 = vld [vmem:[%s543] sm:$0xf]
      %v546 = vsel %vm57, %v41, 0
      %v549 = vsel %vm61, %v544, 0
      %551 = vmatprep.subr.mxu0 0.0
      %552 = vmatpush1.msra.mxu0 %v549
      %553 = vmatprep.subr.mxu0 0.0
      %554 = vmatpush1.msra.mxu0 0.0
      %555 = vmatprep.subr.mxu0 0.0
      %556 = vmatpush1.msra.mxu0 0.0
      %557 = vmatprep.subr.mxu0 0.0
      %558 = vmatpush1.msra.mxu0 0.0
      %559 = vmatprep.subr.mxu0 0.0
      %560 = vmatpush1.msra.mxu0 0.0
      %561 = vmatprep.subr.mxu0 0.0
      %562 = vmatpush1.msra.mxu0 0.0
      %563 = vmatprep.subr.mxu0 0.0
      %564 = vmatpush1.msra.mxu0 0.0
      %565 = vmatprep.subr.mxu0 0.0
      %566 = vmatpush1.msra.mxu0 0.0
      %567 = vmatprep.subr.mxu0 0.0
      %568 = vmatpush1.msra.mxu0 0.0
      %569 = vmatprep.subr.mxu0 0.0
      %570 = vmatpush1.msra.mxu0 0.0
      %571 = vmatprep.subr.mxu0 0.0
      %572 = vmatpush1.msra.mxu0 0.0
      %573 = vmatprep.subr.mxu0 0.0
      %574 = vmatpush1.msra.mxu0 0.0
      %575 = vmatprep.subr.mxu0 0.0
      %576 = vmatpush1.msra.mxu0 0.0
      %577 = vmatprep.subr.mxu0 0.0
      %578 = vmatpush1.msra.mxu0 0.0
      %579 = vmatprep.subr.mxu0 0.0
      %580 = vmatpush1.msra.mxu0 0.0
      %581 = vmatprep.subr.mxu0 0.0
      %582 = vmatpush1.msra.mxu0 0.0
      %583 = vmatprep.subr.mxu0 0.0
      %584 = vmatpush1.msra.mxu0 0.0
      %585 = vmatprep.subr.mxu0 0.0
      %586 = vmatpush1.msra.mxu0 0.0
      %587 = vmatprep.subr.mxu0 0.0
      %588 = vmatpush1.msra.mxu0 0.0
      %589 = vmatprep.subr.mxu0 0.0
      %590 = vmatpush1.msra.mxu0 0.0
      %591 = vmatprep.subr.mxu0 0.0
      %592 = vmatpush1.msra.mxu0 0.0
      %593 = vmatprep.subr.mxu0 0.0
      %594 = vmatpush1.msra.mxu0 0.0
      %595 = vmatprep.subr.mxu0 0.0
      %596 = vmatpush1.msra.mxu0 0.0
      %597 = vmatprep.subr.mxu0 0.0
      %598 = vmatpush1.msra.mxu0 0.0
      %599 = vmatprep.subr.mxu0 0.0
      %600 = vmatpush1.msra.mxu0 0.0
      %601 = vmatprep.subr.mxu0 0.0
      %602 = vmatpush1.msra.mxu0 0.0
      %603 = vmatprep.subr.mxu0 0.0
      %604 = vmatpush1.msra.mxu0 0.0
      %605 = vmatprep.subr.mxu0 0.0
      %606 = vmatpush1.msra.mxu0 0.0
      %607 = vmatprep.subr.mxu0 0.0
      %608 = vmatpush1.msra.mxu0 0.0
      %609 = vmatprep.subr.mxu0 0.0
      %610 = vmatpush1.msra.mxu0 0.0
      %611 = vmatprep.subr.mxu0 0.0
      %612 = vmatpush1.msra.mxu0 0.0
      %613 = vmatprep.subr.mxu0 0.0
      %614 = vmatpush1.msra.mxu0 0.0
      %615 = vmatprep.mubr.f32.mxu0 0.0
      %616 = vmatmul.mubr.f32.gmra.mrb[0].mxu0 %v546
      %v617 = vpop.f32.mrb[0].mxu0
      %v618 = vadd.f32 0.0, %v617
      %v619 = vpop.f32.mrb[0].mxu0
      %620 = vdwg.mxu0
      %v621 = vadd.f32 %v540, %v618
      %s622 = smul.u32 %s49, 8
      %s623 = scalar_lea.vmem [#allocation5], %s622
      %624 = vst [vmem:[%s623] sm:$0xff] %v621
    $region22: #{tpu_custom_call.1} parent=1 // loop_footer
      %s53 = sadd.s32 1, %s49
    $region23: #{tpu_custom_call.1} parent=1 // loop_footer_branch
      %48 = sbr.rel target = $region19
    $region24: #{tpu_custom_call.1} parent=1 // loop_exit
      _
    // Predicated region
    $region25: #{tpu_custom_call.1} parent=1 // pred_check
      _
    $region26: #{tpu_custom_call.1} parent=1 // pred_check_branch
      %626 = sbr.rel (0) target = $region28
    $region27: #{tpu_custom_call.1} parent=1 // pred_region
      %s628 = ssub.s32 2560, 2560
      %629 = vsyncadd [#allocation4], %s628
      %s630 = sshll.u32 [#allocation5], 4
      %s631 = int_to_ptr.vmem [resolvable:$true] %s630
      %636 = dma.vmem_to_hbm [thread:$0]  %s631, 2560, %s3, [#allocation4], 128, 128, 8
    $region28: #{tpu_custom_call.1} parent=1 // pred_fallthru
      _
    // Predicated region
    $region29: #{tpu_custom_call.1} parent=1 // pred_check
      _
    $region30: #{tpu_custom_call.1} parent=1 // pred_check_branch
      %638 = sbr.rel (0) target = $region32
    $region31: #{tpu_custom_call.1} parent=1 // pred_region
      %639 = dma.done [#allocation4], 2560
    $region32: #{tpu_custom_call.1} parent=1 // pred_fallthru
      _
    %640 = vsyncpa [#allocation3], 1
    %641 = vsyncpa [#allocation4], 1

</llo_original>
